<compile_context>
chip_gen: v5e
topology: v5e:2x2
jax: 0.10.0
libtpu: 0.0.40
codegen_flags: <defaults>
</compile_context>

<pallas_src>
import functools

import jax
import jax.numpy as jnp
from jax.experimental import pallas as pl
from jax.experimental.pallas import tpu as pltpu


def _pcb_mean_kernel(x_ref, sel_ref, o_ref, *, inv_hw):
    # x_ref: (t_nc, H*W) lane-dense tile; sel_ref: (H*W, p) resident selector.
    # Strip sums on the (otherwise idle) MXU, f32 accumulation; exact scale on
    # the tiny accumulator, then cast back to the input dtype.
    acc = jnp.dot(
        x_ref[...],
        sel_ref[...],
        preferred_element_type=jnp.float32,
        precision=jax.lax.Precision.HIGHEST,
    )
    o_ref[...] = (acc * inv_hw).astype(o_ref.dtype)


def _pick_nc_tile(nc, hw_pad, itemsize, sub,
                  target_bytes=8 * 1024 * 1024, min_steps=4):
    """Tile along N*C sized by the PADDED VMEM footprint of a block.

    hw_pad is the lane-padded H*W (multiple of 128); sub is the sublane
    granularity for this dtype (8 for f32, 16 for bf16, 32 for int8).
    """
    row_bytes = hw_pad * itemsize                    # padded bytes per NC row
    t = max(sub, (target_bytes // row_bytes) // sub * sub)
    nc_pad = -(-nc // sub) * sub
    t = min(t, nc_pad)
    # Prefer >= min_steps grid iterations (megacore sharding on v7x, DMA/compute
    # overlap), but never shrink a block below ~1 MiB of padded bytes.
    t_steps = max(sub, (-(-nc // min_steps)) // sub * sub)
    if t_steps * row_bytes >= (1 << 20):
        t = min(t, t_steps)
    return t


def pcb_forward(x, p=6):
    """x: (N, C, H, W), H % p == 0. Returns a list of p arrays (N, C, 1, 1)."""
    N, C, H, W = x.shape
    assert H % p == 0
    h = H // p
    HW = H * W
    NC = N * C

    # Free view (no data movement): (N, C, H, W) -> (N*C, H*W); each strip i is
    # the contiguous flattened range [i*h*W, (i+1)*h*W).
    x_view = x.reshape(NC, HW)

    itemsize = jnp.dtype(x.dtype).itemsize
    sub = max(8, 32 // itemsize)                     # sublane granularity
    hw_pad = -(-HW // 128) * 128                     # lane-padded H*W

    t_nc = _pick_nc_tile(NC, hw_pad, itemsize, sub)
    grid = (pl.cdiv(NC, t_nc),)

    # Static 0/1 strip-selector (H*W, p); 1/(h*W) is applied after the matmul
    # so the selector is exact even in bf16.
    strip_of = jnp.arange(HW, dtype=jnp.int32) // (h * W)
    sel = (strip_of[:, None] == jnp.arange(p, dtype=jnp.int32)[None, :]).astype(x.dtype)
    # TODO(synk): for very large H*W the (H*W, p)->(H*W, 128) lane pad of the
    # resident selector grows; PCB backbone features (e.g. 24x8) make it tiny.

    # Padded VMEM budget check (double-buffered input + selector + output).
    in_block_b = t_nc * hw_pad * itemsize
    sel_block_b = (-(-HW // sub) * sub) * 128 * itemsize
    out_block_b = t_nc * 128 * itemsize
    needed = 2 * (in_block_b + sel_block_b + out_block_b) + (4 << 20)
    vmem_limit = int(min(64 << 20, max(32 << 20, needed)))

    kernel = functools.partial(_pcb_mean_kernel, inv_hw=1.0 / float(h * W))

    out = pl.pallas_call(
        kernel,
        out_shape=jax.ShapeDtypeStruct((NC, p), x.dtype),
        grid_spec=pltpu.PrefetchScalarGridSpec(
            num_scalar_prefetch=0,
            grid=grid,
            in_specs=[
                pl.BlockSpec((t_nc, HW), lambda i: (i, 0)),   # streamed input
                pl.BlockSpec((HW, p), lambda i: (0, 0)),      # resident selector
            ],
            out_specs=pl.BlockSpec((t_nc, p), lambda i: (i, 0)),
        ),
        compiler_params=pltpu.CompilerParams(
            dimension_semantics=("parallel",),        # NC axis shards across TCs
            vmem_limit_bytes=vmem_limit,
        ),
        cost_estimate=pl.CostEstimate(
            flops=2 * NC * HW * p,
            transcendentals=0,
            bytes_accessed=NC * HW * itemsize + NC * p * itemsize + HW * p * itemsize,
        ),
    )(x_view, sel)                                    # (NC, p)

    # Tiny epilogue reshape: (NC, p) -> list of p arrays (N, C, 1, 1).
    out = out.reshape(N, C, p)
    out = jnp.transpose(out, (2, 0, 1)).reshape(p, N, C, 1, 1)
    return [out[i] for i in range(p)]


if __name__ == "__main__":
    p = 6
    N, C, W = 2, 4, 16
    H = 12  # divisible by p -> h = 2

    key = jax.random.PRNGKey(0)
    x = jax.random.normal(key, (N, C, H, W), dtype=jnp.float32)

    ys = pcb_forward(x, p=p)
    ys = [jax.block_until_ready(y) for y in ys]

    # Reference check (plain JAX) of the same semantics.
    h = H // p
    for i in range(p):
        ref = jnp.mean(x[:, :, i * h:(i + 1) * h, :], axis=(2, 3), keepdims=True)
        assert ys[i].shape == (N, C, 1, 1)
        assert jnp.allclose(ys[i], ref, atol=2e-5, rtol=2e-5), f"part {i} mismatch"

    print("KERNEL_OK")
</pallas_src>

<mosaic_0001>
module attributes {stable_mosaic.version = 11 : i64} {
  func.func @_pcb_mean_kernel(%arg0: i32, %arg1: memref<8x192xf32, #tpu.memory_space<vmem>>, %arg2: memref<192x6xf32, #tpu.memory_space<vmem>>, %arg3: memref<8x6xf32, #tpu.memory_space<vmem>>) attributes {dimension_semantics = [#tpu.dimension_semantics<parallel>], iteration_bounds = array<i64: 1>, scalar_prefetch = 0 : i64, scratch_operands = 0 : i64, tpu.core_type = #tpu.core_type<tc>, window_params = [{transform_indices = @transform_0, window_bounds = array<i64: 8, 192>}, {pipeline_mode = #tpu.pipeline_mode<synchronous>, transform_indices = @transform_1, window_bounds = array<i64: 192, 6>}, {transform_indices = @transform_2, window_bounds = array<i64: 8, 6>}]} {
    %c0 = arith.constant 0 : index
    %c0_0 = arith.constant 0 : index
    %0 = vector.load %arg1[%c0, %c0_0] : memref<8x192xf32, #tpu.memory_space<vmem>>, vector<8x192xf32>
    %c0_1 = arith.constant 0 : index
    %c0_2 = arith.constant 0 : index
    %1 = vector.load %arg2[%c0_1, %c0_2] : memref<192x6xf32, #tpu.memory_space<vmem>>, vector<192x6xf32>
    %cst = arith.constant dense<0.000000e+00> : vector<8x6xf32>
    %2 = tpu.matmul %0, %1, %cst {dimension_numbers = #tpu.dot_dimension_numbers<[1], [0], [0], [1], [0, 0, 1, 1], [], []>, precision = #tpu.contract_precision<fp32>} : vector<8x192xf32>, vector<192x6xf32>, vector<8x6xf32> -> vector<8x6xf32>
    %cst_3 = arith.constant 3.125000e-02 : f32
    %3 = vector.broadcast %cst_3 : f32 to vector<8x6xf32>
    %4 = arith.mulf %2, %3 : vector<8x6xf32>
    %c0_4 = arith.constant 0 : index
    %c0_5 = arith.constant 0 : index
    %5 = vector.load %arg3[%c0_4, %c0_5] : memref<8x6xf32, #tpu.memory_space<vmem>>, vector<8x6xf32>
    tpu.vector_store %arg3[%c0_4, %c0_5], %4 {strides = array<i32>} : memref<8x6xf32, #tpu.memory_space<vmem>>, vector<8x6xf32>,
    return
  }
  func.func @transform_0(%arg0: i32) -> (i32, i32) {
    %c0_i32 = arith.constant 0 : i32
    %c0_i32_0 = arith.constant 0 : i32
    return %arg0, %c0_i32 : i32, i32
  }
  func.func @transform_1(%arg0: i32) -> (i32, i32) {
    %c0_i32 = arith.constant 0 : i32
    %c0_i32_0 = arith.constant 0 : i32
    %c0_i32_1 = arith.constant 0 : i32
    return %c0_i32, %c0_i32_0 : i32, i32
  }
  func.func @transform_2(%arg0: i32) -> (i32, i32) {
    %c0_i32 = arith.constant 0 : i32
    %c0_i32_0 = arith.constant 0 : i32
    return %arg0, %c0_i32 : i32, i32
  }
}

</mosaic_0001>

<llo_original>
// kernel: tpu_custom_call.1
$region0: #{tpu_custom_call.1}
  #allocation0 [shape = 'u32[]', space=smem, size = 0x4, offset = 0x4, fixed_abs, tag = 'smem constant byte address 0x4 - core index']
  #allocation1 [shape = 'u32[72,128]{1,0:T(1,128)}', space=vmem, size = 0x9000, scoped, tag = 'internal scratch']
  %s0 = inlined_call_operand.vmem [shape: f32[8,192], index: 0, kind: input, shape index: {}]
  %s1 = inlined_call_operand.vmem [shape: f32[192,6], index: 1, kind: input, shape index: {}]
  %s2 = inlined_call_operand.hbm [shape: f32[8,6], index: 2, kind: output, shape index: {}]
  %s3 = sld [smem:[#allocation0]]
  $region18: #{tpu_custom_call.1} parent=0
    _
  %s5 = ssub.s32 1, %s3
  %s6 = scalar_select 0, %s5, %s3
  $region1: #{tpu_custom_call.1} parent=0
    #allocation2 [shape = 'u8[4096]{0}', space=vmem, size = 0x1000, scoped, tag = 'output window, operand 0, single buffered']
    #allocation3 [shape = 's32[1]{0}', space=sflag, size = 0x4, scoped, tag = 'scoped memory for tpu_custom_call.1']
    %7 = vsyncpa [#allocation3], 0
    // Predicated region
    $region2: #{tpu_custom_call.1} parent=1 // pred_check
      _
    $region3: #{tpu_custom_call.1} parent=1 // pred_check_branch
      %9 = sbr.rel (0) target = $region5
    $region4: #{tpu_custom_call.1} parent=1 // pred_region
      _
    $region5: #{tpu_custom_call.1} parent=1 // pred_fallthru
      _
    // Predicated region
    $region6: #{tpu_custom_call.1} parent=1 // pred_check
      _
    $region7: #{tpu_custom_call.1} parent=1 // pred_check_branch
      %11 = sbr.rel (0) target = $region9
    $region8: #{tpu_custom_call.1} parent=1 // pred_region
      _
    $region9: #{tpu_custom_call.1} parent=1 // pred_fallthru
      _
    %v12 = vld [vmem:[%s0] sm:$0xff]
    %v13 = vld [vmem:[%s0 + $0x8] sm:$0xff]
    %v14 = vld [vmem:[%s1] sm:$0xff]
    %v15 = vld [vmem:[%s1 + $0x8] sm:$0xff]
    %v16 = vld [vmem:[%s1 + $0x10] sm:$0xff]
    %v17 = vld [vmem:[%s1 + $0x18] sm:$0xff]
    %v18 = vld [vmem:[%s1 + $0x20] sm:$0xff]
    %v19 = vld [vmem:[%s1 + $0x28] sm:$0xff]
    %v20 = vld [vmem:[%s1 + $0x30] sm:$0xff]
    %v21 = vld [vmem:[%s1 + $0x38] sm:$0xff]
    %v22 = vld [vmem:[%s1 + $0x40] sm:$0xff]
    %v23 = vld [vmem:[%s1 + $0x48] sm:$0xff]
    %v24 = vld [vmem:[%s1 + $0x50] sm:$0xff]
    %v25 = vld [vmem:[%s1 + $0x58] sm:$0xff]
    %v26 = vld [vmem:[%s1 + $0x60] sm:$0xff]
    %v27 = vld [vmem:[%s1 + $0x68] sm:$0xff]
    %v28 = vld [vmem:[%s1 + $0x70] sm:$0xff]
    %v29 = vld [vmem:[%s1 + $0x78] sm:$0xff]
    %v30 = vld [vmem:[%s1 + $0x80] sm:$0xff]
    %v31 = vld [vmem:[%s1 + $0x88] sm:$0xff]
    %v32 = vld [vmem:[%s1 + $0x90] sm:$0xff]
    %v33 = vld [vmem:[%s1 + $0x98] sm:$0xff]
    %v34 = vld [vmem:[%s1 + $0xa0] sm:$0xff]
    %v35 = vld [vmem:[%s1 + $0xa8] sm:$0xff]
    %v36 = vld [vmem:[%s1 + $0xb0] sm:$0xff]
    %v37 = vld [vmem:[%s1 + $0xb8] sm:$0xff]
    %vm38 = vcmask 523264
    %v40 = vsel %vm38, %v13, 0
    %v42 = vand.u32 %v29, 4294901760
    %43 = vmatpush.msra.mxu0 %v42
    %v44 = vand.u32 %v28, 4294901760
    %45 = vmatpush.msra.mxu0 %v44
    %v46 = vand.u32 %v27, 4294901760
    %47 = vmatpush.msra.mxu0 %v46
    %v48 = vand.u32 %v26, 4294901760
    %49 = vmatpush.msra.mxu0 %v48
    %v50 = vand.u32 %v25, 4294901760
    %51 = vmatpush.msra.mxu0 %v50
    %v52 = vand.u32 %v24, 4294901760
    %53 = vmatpush.msra.mxu0 %v52
    %v54 = vand.u32 %v23, 4294901760
    %55 = vmatpush.msra.mxu0 %v54
    %v56 = vand.u32 %v22, 4294901760
    %57 = vmatpush.msra.mxu0 %v56
    %v58 = vand.u32 %v21, 4294901760
    %59 = vmatpush.msra.mxu0 %v58
    %v60 = vand.u32 %v20, 4294901760
    %61 = vmatpush.msra.mxu0 %v60
    %v62 = vand.u32 %v19, 4294901760
    %63 = vmatpush.msra.mxu0 %v62
    %v64 = vand.u32 %v18, 4294901760
    %65 = vmatpush.msra.mxu0 %v64
    %v66 = vand.u32 %v17, 4294901760
    %67 = vmatpush.msra.mxu0 %v66
    %v68 = vand.u32 %v16, 4294901760
    %69 = vmatpush.msra.mxu0 %v68
    %v70 = vand.u32 %v15, 4294901760
    %71 = vmatpush.msra.mxu0 %v70
    %v72 = vand.u32 %v14, 4294901760
    %73 = vmatpush.msra.mxu0 %v72
    %v74 = vand.u32 %v12, 4294901760
    %v75 = vsub.f32 %v12, %v74
    %v76 = vand.u32 %v75, 4294901760
    %v77 = vsub.f32 %v75, %v76
    %v78 = vand.u32 %v77, 4294901760
    %79 = vmatmul.f32.gmra.mxu0 %v78
    %v80 = vpop.f32.mrf.mxu0
    %v81 = vadd.f32 0.0, %v80
    %82 = vdwg.mxu0
    %v83 = vand.u32 %v29, 4294901760
    %v84 = vsub.f32 %v29, %v83
    %v85 = vand.u32 %v84, 4294901760
    %v86 = vsub.f32 %v84, %v85
    %v87 = vand.u32 %v86, 4294901760
    %88 = vmatpush.msra.mxu0 %v87
    %v89 = vand.u32 %v28, 4294901760
    %v90 = vsub.f32 %v28, %v89
    %v91 = vand.u32 %v90, 4294901760
    %v92 = vsub.f32 %v90, %v91
    %v93 = vand.u32 %v92, 4294901760
    %94 = vmatpush.msra.mxu0 %v93
    %v95 = vand.u32 %v27, 4294901760
    %v96 = vsub.f32 %v27, %v95
    %v97 = vand.u32 %v96, 4294901760
    %v98 = vsub.f32 %v96, %v97
    %v99 = vand.u32 %v98, 4294901760
    %100 = vmatpush.msra.mxu0 %v99
    %v101 = vand.u32 %v26, 4294901760
    %v102 = vsub.f32 %v26, %v101
    %v103 = vand.u32 %v102, 4294901760
    %v104 = vsub.f32 %v102, %v103
    %v105 = vand.u32 %v104, 4294901760
    %106 = vmatpush.msra.mxu0 %v105
    %v107 = vand.u32 %v25, 4294901760
    %v108 = vsub.f32 %v25, %v107
    %v109 = vand.u32 %v108, 4294901760
    %v110 = vsub.f32 %v108, %v109
    %v111 = vand.u32 %v110, 4294901760
    %112 = vmatpush.msra.mxu0 %v111
    %v113 = vand.u32 %v24, 4294901760
    %v114 = vsub.f32 %v24, %v113
    %v115 = vand.u32 %v114, 4294901760
    %v116 = vsub.f32 %v114, %v115
    %v117 = vand.u32 %v116, 4294901760
    %118 = vmatpush.msra.mxu0 %v117
    %v119 = vand.u32 %v23, 4294901760
    %v120 = vsub.f32 %v23, %v119
    %v121 = vand.u32 %v120, 4294901760
    %v122 = vsub.f32 %v120, %v121
    %v123 = vand.u32 %v122, 4294901760
    %124 = vmatpush.msra.mxu0 %v123
    %v125 = vand.u32 %v22, 4294901760
    %v126 = vsub.f32 %v22, %v125
    %v127 = vand.u32 %v126, 4294901760
    %v128 = vsub.f32 %v126, %v127
    %v129 = vand.u32 %v128, 4294901760
    %130 = vmatpush.msra.mxu0 %v129
    %v131 = vand.u32 %v21, 4294901760
    %v132 = vsub.f32 %v21, %v131
    %v133 = vand.u32 %v132, 4294901760
    %v134 = vsub.f32 %v132, %v133
    %v135 = vand.u32 %v134, 4294901760
    %136 = vmatpush.msra.mxu0 %v135
    %v137 = vand.u32 %v20, 4294901760
    %v138 = vsub.f32 %v20, %v137
    %v139 = vand.u32 %v138, 4294901760
    %v140 = vsub.f32 %v138, %v139
    %v141 = vand.u32 %v140, 4294901760
    %142 = vmatpush.msra.mxu0 %v141
    %v143 = vand.u32 %v19, 4294901760
    %v144 = vsub.f32 %v19, %v143
    %v145 = vand.u32 %v144, 4294901760
    %v146 = vsub.f32 %v144, %v145
    %v147 = vand.u32 %v146, 4294901760
    %148 = vmatpush.msra.mxu0 %v147
    %v149 = vand.u32 %v18, 4294901760
    %v150 = vsub.f32 %v18, %v149
    %v151 = vand.u32 %v150, 4294901760
    %v152 = vsub.f32 %v150, %v151
    %v153 = vand.u32 %v152, 4294901760
    %154 = vmatpush.msra.mxu0 %v153
    %v155 = vand.u32 %v17, 4294901760
    %v156 = vsub.f32 %v17, %v155
    %v157 = vand.u32 %v156, 4294901760
    %v158 = vsub.f32 %v156, %v157
    %v159 = vand.u32 %v158, 4294901760
    %160 = vmatpush.msra.mxu0 %v159
    %v161 = vand.u32 %v16, 4294901760
    %v162 = vsub.f32 %v16, %v161
    %v163 = vand.u32 %v162, 4294901760
    %v164 = vsub.f32 %v162, %v163
    %v165 = vand.u32 %v164, 4294901760
    %166 = vmatpush.msra.mxu0 %v165
    %v167 = vand.u32 %v15, 4294901760
    %v168 = vsub.f32 %v15, %v167
    %v169 = vand.u32 %v168, 4294901760
    %v170 = vsub.f32 %v168, %v169
    %v171 = vand.u32 %v170, 4294901760
    %172 = vmatpush.msra.mxu0 %v171
    %v173 = vand.u32 %v14, 4294901760
    %v174 = vsub.f32 %v14, %v173
    %v175 = vand.u32 %v174, 4294901760
    %v176 = vsub.f32 %v174, %v175
    %v177 = vand.u32 %v176, 4294901760
    %178 = vmatpush.msra.mxu0 %v177
    %v179 = vand.u32 %v12, 4294901760
    %180 = vmatmul.f32.gmra.mxu0 %v179
    %v181 = vpop.f32.mrf.mxu0
    %v182 = vadd.f32 %v81, %v181
    %183 = vdwg.mxu0
    %v184 = vand.u32 %v29, 4294901760
    %v185 = vsub.f32 %v29, %v184
    %186 = vmatpush.msra.mxu0 %v185
    %v187 = vand.u32 %v28, 4294901760
    %v188 = vsub.f32 %v28, %v187
    %189 = vmatpush.msra.mxu0 %v188
    %v190 = vand.u32 %v27, 4294901760
    %v191 = vsub.f32 %v27, %v190
    %192 = vmatpush.msra.mxu0 %v191
    %v193 = vand.u32 %v26, 4294901760
    %v194 = vsub.f32 %v26, %v193
    %195 = vmatpush.msra.mxu0 %v194
    %v196 = vand.u32 %v25, 4294901760
    %v197 = vsub.f32 %v25, %v196
    %198 = vmatpush.msra.mxu0 %v197
    %v199 = vand.u32 %v24, 4294901760
    %v200 = vsub.f32 %v24, %v199
    %201 = vmatpush.msra.mxu0 %v200
    %v202 = vand.u32 %v23, 4294901760
    %v203 = vsub.f32 %v23, %v202
    %204 = vmatpush.msra.mxu0 %v203
    %v205 = vand.u32 %v22, 4294901760
    %v206 = vsub.f32 %v22, %v205
    %207 = vmatpush.msra.mxu0 %v206
    %v208 = vand.u32 %v21, 4294901760
    %v209 = vsub.f32 %v21, %v208
    %210 = vmatpush.msra.mxu0 %v209
    %v211 = vand.u32 %v20, 4294901760
    %v212 = vsub.f32 %v20, %v211
    %213 = vmatpush.msra.mxu0 %v212
    %v214 = vand.u32 %v19, 4294901760
    %v215 = vsub.f32 %v19, %v214
    %216 = vmatpush.msra.mxu0 %v215
    %v217 = vand.u32 %v18, 4294901760
    %v218 = vsub.f32 %v18, %v217
    %219 = vmatpush.msra.mxu0 %v218
    %v220 = vand.u32 %v17, 4294901760
    %v221 = vsub.f32 %v17, %v220
    %222 = vmatpush.msra.mxu0 %v221
    %v223 = vand.u32 %v16, 4294901760
    %v224 = vsub.f32 %v16, %v223
    %225 = vmatpush.msra.mxu0 %v224
    %v226 = vand.u32 %v15, 4294901760
    %v227 = vsub.f32 %v15, %v226
    %228 = vmatpush.msra.mxu0 %v227
    %v229 = vand.u32 %v14, 4294901760
    %v230 = vsub.f32 %v14, %v229
    %231 = vmatpush.msra.mxu0 %v230
    %v232 = vand.u32 %v12, 4294901760
    %v233 = vsub.f32 %v12, %v232
    %234 = vmatmul.f32.gmra.mxu0 %v233
    %v235 = vpop.f32.mrf.mxu0
    %v236 = vadd.f32 %v182, %v235
    %237 = vdwg.mxu0
    %v238 = vand.u32 %v29, 4294901760
    %239 = vmatpush.msra.mxu0 %v238
    %v240 = vand.u32 %v28, 4294901760
    %241 = vmatpush.msra.mxu0 %v240
    %v242 = vand.u32 %v27, 4294901760
    %243 = vmatpush.msra.mxu0 %v242
    %v244 = vand.u32 %v26, 4294901760
    %245 = vmatpush.msra.mxu0 %v244
    %v246 = vand.u32 %v25, 4294901760
    %247 = vmatpush.msra.mxu0 %v246
    %v248 = vand.u32 %v24, 4294901760
    %249 = vmatpush.msra.mxu0 %v248
    %v250 = vand.u32 %v23, 4294901760
    %251 = vmatpush.msra.mxu0 %v250
    %v252 = vand.u32 %v22, 4294901760
    %253 = vmatpush.msra.mxu0 %v252
    %v254 = vand.u32 %v21, 4294901760
    %255 = vmatpush.msra.mxu0 %v254
    %v256 = vand.u32 %v20, 4294901760
    %257 = vmatpush.msra.mxu0 %v256
    %v258 = vand.u32 %v19, 4294901760
    %259 = vmatpush.msra.mxu0 %v258
    %v260 = vand.u32 %v18, 4294901760
    %261 = vmatpush.msra.mxu0 %v260
    %v262 = vand.u32 %v17, 4294901760
    %263 = vmatpush.msra.mxu0 %v262
    %v264 = vand.u32 %v16, 4294901760
    %265 = vmatpush.msra.mxu0 %v264
    %v266 = vand.u32 %v15, 4294901760
    %267 = vmatpush.msra.mxu0 %v266
    %v268 = vand.u32 %v14, 4294901760
    %269 = vmatpush.msra.mxu0 %v268
    %v270 = vand.u32 %v12, 4294901760
    %v271 = vsub.f32 %v12, %v270
    %v272 = vand.u32 %v271, 4294901760
    %273 = vmatmul.f32.gmra.mxu0 %v272
    %v274 = vpop.f32.mrf.mxu0
    %v275 = vadd.f32 %v236, %v274
    %276 = vdwg.mxu0
    %v277 = vand.u32 %v29, 4294901760
    %v278 = vsub.f32 %v29, %v277
    %v279 = vand.u32 %v278, 4294901760
    %280 = vmatpush.msra.mxu0 %v279
    %v281 = vand.u32 %v28, 4294901760
    %v282 = vsub.f32 %v28, %v281
    %v283 = vand.u32 %v282, 4294901760
    %284 = vmatpush.msra.mxu0 %v283
    %v285 = vand.u32 %v27, 4294901760
    %v286 = vsub.f32 %v27, %v285
    %v287 = vand.u32 %v286, 4294901760
    %288 = vmatpush.msra.mxu0 %v287
    %v289 = vand.u32 %v26, 4294901760
    %v290 = vsub.f32 %v26, %v289
    %v291 = vand.u32 %v290, 4294901760
    %292 = vmatpush.msra.mxu0 %v291
    %v293 = vand.u32 %v25, 4294901760
    %v294 = vsub.f32 %v25, %v293
    %v295 = vand.u32 %v294, 4294901760
    %296 = vmatpush.msra.mxu0 %v295
    %v297 = vand.u32 %v24, 4294901760
    %v298 = vsub.f32 %v24, %v297
    %v299 = vand.u32 %v298, 4294901760
    %300 = vmatpush.msra.mxu0 %v299
    %v301 = vand.u32 %v23, 4294901760
    %v302 = vsub.f32 %v23, %v301
    %v303 = vand.u32 %v302, 4294901760
    %304 = vmatpush.msra.mxu0 %v303
    %v305 = vand.u32 %v22, 4294901760
    %v306 = vsub.f32 %v22, %v305
    %v307 = vand.u32 %v306, 4294901760
    %308 = vmatpush.msra.mxu0 %v307
    %v309 = vand.u32 %v21, 4294901760
    %v310 = vsub.f32 %v21, %v309
    %v311 = vand.u32 %v310, 4294901760
    %312 = vmatpush.msra.mxu0 %v311
    %v313 = vand.u32 %v20, 4294901760
    %v314 = vsub.f32 %v20, %v313
    %v315 = vand.u32 %v314, 4294901760
    %316 = vmatpush.msra.mxu0 %v315
    %v317 = vand.u32 %v19, 4294901760
    %v318 = vsub.f32 %v19, %v317
    %v319 = vand.u32 %v318, 4294901760
    %320 = vmatpush.msra.mxu0 %v319
    %v321 = vand.u32 %v18, 4294901760
    %v322 = vsub.f32 %v18, %v321
    %v323 = vand.u32 %v322, 4294901760
    %324 = vmatpush.msra.mxu0 %v323
    %v325 = vand.u32 %v17, 4294901760
    %v326 = vsub.f32 %v17, %v325
    %v327 = vand.u32 %v326, 4294901760
    %328 = vmatpush.msra.mxu0 %v327
    %v329 = vand.u32 %v16, 4294901760
    %v330 = vsub.f32 %v16, %v329
    %v331 = vand.u32 %v330, 4294901760
    %332 = vmatpush.msra.mxu0 %v331
    %v333 = vand.u32 %v15, 4294901760
    %v334 = vsub.f32 %v15, %v333
    %v335 = vand.u32 %v334, 4294901760
    %336 = vmatpush.msra.mxu0 %v335
    %v337 = vand.u32 %v14, 4294901760
    %v338 = vsub.f32 %v14, %v337
    %v339 = vand.u32 %v338, 4294901760
    %340 = vmatpush.msra.mxu0 %v339
    %v341 = vand.u32 %v12, 4294901760
    %342 = vmatmul.f32.gmra.mxu0 %v341
    %v343 = vpop.f32.mrf.mxu0
    %v344 = vadd.f32 %v275, %v343
    %345 = vdwg.mxu0
    %v346 = vand.u32 %v29, 4294901760
    %347 = vmatpush.msra.mxu0 %v346
    %v348 = vand.u32 %v28, 4294901760
    %349 = vmatpush.msra.mxu0 %v348
    %v350 = vand.u32 %v27, 4294901760
    %351 = vmatpush.msra.mxu0 %v350
    %v352 = vand.u32 %v26, 4294901760
    %353 = vmatpush.msra.mxu0 %v352
    %v354 = vand.u32 %v25, 4294901760
    %355 = vmatpush.msra.mxu0 %v354
    %v356 = vand.u32 %v24, 4294901760
    %357 = vmatpush.msra.mxu0 %v356
    %v358 = vand.u32 %v23, 4294901760
    %359 = vmatpush.msra.mxu0 %v358
    %v360 = vand.u32 %v22, 4294901760
    %361 = vmatpush.msra.mxu0 %v360
    %v362 = vand.u32 %v21, 4294901760
    %363 = vmatpush.msra.mxu0 %v362
    %v364 = vand.u32 %v20, 4294901760
    %365 = vmatpush.msra.mxu0 %v364
    %v366 = vand.u32 %v19, 4294901760
    %367 = vmatpush.msra.mxu0 %v366
    %v368 = vand.u32 %v18, 4294901760
    %369 = vmatpush.msra.mxu0 %v368
    %v370 = vand.u32 %v17, 4294901760
    %371 = vmatpush.msra.mxu0 %v370
    %v372 = vand.u32 %v16, 4294901760
    %373 = vmatpush.msra.mxu0 %v372
    %v374 = vand.u32 %v15, 4294901760
    %375 = vmatpush.msra.mxu0 %v374
    %v376 = vand.u32 %v14, 4294901760
    %377 = vmatpush.msra.mxu0 %v376
    %v378 = vand.u32 %v12, 4294901760
    %379 = vmatmul.f32.gmra.mxu0 %v378
    %v380 = vpop.f32.mrf.mxu0
    %v381 = vadd.f32 %v344, %v380
    %382 = vdwg.mxu0
    %383 = vmatpush.msra.mxu0 0.0
    %384 = vmatpush.msra.mxu0 0.0
    %385 = vmatpush.msra.mxu0 0.0
    %386 = vmatpush.msra.mxu0 0.0
    %387 = vmatpush.msra.mxu0 0.0
    %388 = vmatpush.msra.mxu0 0.0
    %389 = vmatpush.msra.mxu0 0.0
    %390 = vmatpush.msra.mxu0 0.0
    %v391 = vand.u32 %v37, 4294901760
    %392 = vmatpush.msra.mxu0 %v391
    %v393 = vand.u32 %v36, 4294901760
    %394 = vmatpush.msra.mxu0 %v393
    %v395 = vand.u32 %v35, 4294901760
    %396 = vmatpush.msra.mxu0 %v395
    %v397 = vand.u32 %v34, 4294901760
    %398 = vmatpush.msra.mxu0 %v397
    %v399 = vand.u32 %v33, 4294901760
    %400 = vmatpush.msra.mxu0 %v399
    %v401 = vand.u32 %v32, 4294901760
    %402 = vmatpush.msra.mxu0 %v401
    %v403 = vand.u32 %v31, 4294901760
    %404 = vmatpush.msra.mxu0 %v403
    %v405 = vand.u32 %v30, 4294901760
    %406 = vmatpush.msra.mxu0 %v405
    %v407 = vand.u32 %v40, 4294901760
    %v408 = vsub.f32 %v40, %v407
    %v409 = vand.u32 %v408, 4294901760
    %v410 = vsub.f32 %v408, %v409
    %v411 = vand.u32 %v410, 4294901760
    %412 = vmatmul.f32.gmra.mxu0 %v411
    %v413 = vpop.f32.mrf.mxu0
    %v414 = vadd.f32 %v381, %v413
    %415 = vdwg.mxu0
    %416 = vmatpush.msra.mxu0 0.0
    %417 = vmatpush.msra.mxu0 0.0
    %418 = vmatpush.msra.mxu0 0.0
    %419 = vmatpush.msra.mxu0 0.0
    %420 = vmatpush.msra.mxu0 0.0
    %421 = vmatpush.msra.mxu0 0.0
    %422 = vmatpush.msra.mxu0 0.0
    %423 = vmatpush.msra.mxu0 0.0
    %v424 = vand.u32 %v37, 4294901760
    %v425 = vsub.f32 %v37, %v424
    %v426 = vand.u32 %v425, 4294901760
    %v427 = vsub.f32 %v425, %v426
    %v428 = vand.u32 %v427, 4294901760
    %429 = vmatpush.msra.mxu0 %v428
    %v430 = vand.u32 %v36, 4294901760
    %v431 = vsub.f32 %v36, %v430
    %v432 = vand.u32 %v431, 4294901760
    %v433 = vsub.f32 %v431, %v432
    %v434 = vand.u32 %v433, 4294901760
    %435 = vmatpush.msra.mxu0 %v434
    %v436 = vand.u32 %v35, 4294901760
    %v437 = vsub.f32 %v35, %v436
    %v438 = vand.u32 %v437, 4294901760
    %v439 = vsub.f32 %v437, %v438
    %v440 = vand.u32 %v439, 4294901760
    %441 = vmatpush.msra.mxu0 %v440
    %v442 = vand.u32 %v34, 4294901760
    %v443 = vsub.f32 %v34, %v442
    %v444 = vand.u32 %v443, 4294901760
    %v445 = vsub.f32 %v443, %v444
    %v446 = vand.u32 %v445, 4294901760
    %447 = vmatpush.msra.mxu0 %v446
    %v448 = vand.u32 %v33, 4294901760
    %v449 = vsub.f32 %v33, %v448
    %v450 = vand.u32 %v449, 4294901760
    %v451 = vsub.f32 %v449, %v450
    %v452 = vand.u32 %v451, 4294901760
    %453 = vmatpush.msra.mxu0 %v452
    %v454 = vand.u32 %v32, 4294901760
    %v455 = vsub.f32 %v32, %v454
    %v456 = vand.u32 %v455, 4294901760
    %v457 = vsub.f32 %v455, %v456
    %v458 = vand.u32 %v457, 4294901760
    %459 = vmatpush.msra.mxu0 %v458
    %v460 = vand.u32 %v31, 4294901760
    %v461 = vsub.f32 %v31, %v460
    %v462 = vand.u32 %v461, 4294901760
    %v463 = vsub.f32 %v461, %v462
    %v464 = vand.u32 %v463, 4294901760
    %465 = vmatpush.msra.mxu0 %v464
    %v466 = vand.u32 %v30, 4294901760
    %v467 = vsub.f32 %v30, %v466
    %v468 = vand.u32 %v467, 4294901760
    %v469 = vsub.f32 %v467, %v468
    %v470 = vand.u32 %v469, 4294901760
    %471 = vmatpush.msra.mxu0 %v470
    %v472 = vand.u32 %v40, 4294901760
    %473 = vmatmul.f32.gmra.mxu0 %v472
    %v474 = vpop.f32.mrf.mxu0
    %v475 = vadd.f32 %v414, %v474
    %476 = vdwg.mxu0
    %477 = vmatpush.msra.mxu0 0.0
    %478 = vmatpush.msra.mxu0 0.0
    %479 = vmatpush.msra.mxu0 0.0
    %480 = vmatpush.msra.mxu0 0.0
    %481 = vmatpush.msra.mxu0 0.0
    %482 = vmatpush.msra.mxu0 0.0
    %483 = vmatpush.msra.mxu0 0.0
    %484 = vmatpush.msra.mxu0 0.0
    %v485 = vand.u32 %v37, 4294901760
    %v486 = vsub.f32 %v37, %v485
    %487 = vmatpush.msra.mxu0 %v486
    %v488 = vand.u32 %v36, 4294901760
    %v489 = vsub.f32 %v36, %v488
    %490 = vmatpush.msra.mxu0 %v489
    %v491 = vand.u32 %v35, 4294901760
    %v492 = vsub.f32 %v35, %v491
    %493 = vmatpush.msra.mxu0 %v492
    %v494 = vand.u32 %v34, 4294901760
    %v495 = vsub.f32 %v34, %v494
    %496 = vmatpush.msra.mxu0 %v495
    %v497 = vand.u32 %v33, 4294901760
    %v498 = vsub.f32 %v33, %v497
    %499 = vmatpush.msra.mxu0 %v498
    %v500 = vand.u32 %v32, 4294901760
    %v501 = vsub.f32 %v32, %v500
    %502 = vmatpush.msra.mxu0 %v501
    %v503 = vand.u32 %v31, 4294901760
    %v504 = vsub.f32 %v31, %v503
    %505 = vmatpush.msra.mxu0 %v504
    %v506 = vand.u32 %v30, 4294901760
    %v507 = vsub.f32 %v30, %v506
    %508 = vmatpush.msra.mxu0 %v507
    %v509 = vand.u32 %v40, 4294901760
    %v510 = vsub.f32 %v40, %v509
    %511 = vmatmul.f32.gmra.mxu0 %v510
    %v512 = vpop.f32.mrf.mxu0
    %v513 = vadd.f32 %v475, %v512
    %514 = vdwg.mxu0
    %515 = vmatpush.msra.mxu0 0.0
    %516 = vmatpush.msra.mxu0 0.0
    %517 = vmatpush.msra.mxu0 0.0
    %518 = vmatpush.msra.mxu0 0.0
    %519 = vmatpush.msra.mxu0 0.0
    %520 = vmatpush.msra.mxu0 0.0
    %521 = vmatpush.msra.mxu0 0.0
    %522 = vmatpush.msra.mxu0 0.0
    %v523 = vand.u32 %v37, 4294901760
    %524 = vmatpush.msra.mxu0 %v523
    %v525 = vand.u32 %v36, 4294901760
    %526 = vmatpush.msra.mxu0 %v525
    %v527 = vand.u32 %v35, 4294901760
    %528 = vmatpush.msra.mxu0 %v527
    %v529 = vand.u32 %v34, 4294901760
    %530 = vmatpush.msra.mxu0 %v529
    %v531 = vand.u32 %v33, 4294901760
    %532 = vmatpush.msra.mxu0 %v531
    %v533 = vand.u32 %v32, 4294901760
    %534 = vmatpush.msra.mxu0 %v533
    %v535 = vand.u32 %v31, 4294901760
    %536 = vmatpush.msra.mxu0 %v535
    %v537 = vand.u32 %v30, 4294901760
    %538 = vmatpush.msra.mxu0 %v537
    %v539 = vand.u32 %v40, 4294901760
    %v540 = vsub.f32 %v40, %v539
    %v541 = vand.u32 %v540, 4294901760
    %542 = vmatmul.f32.gmra.mxu0 %v541
    %v543 = vpop.f32.mrf.mxu0
    %v544 = vadd.f32 %v513, %v543
    %545 = vdwg.mxu0
    %546 = vmatpush.msra.mxu0 0.0
    %547 = vmatpush.msra.mxu0 0.0
    %548 = vmatpush.msra.mxu0 0.0
    %549 = vmatpush.msra.mxu0 0.0
    %550 = vmatpush.msra.mxu0 0.0
    %551 = vmatpush.msra.mxu0 0.0
    %552 = vmatpush.msra.mxu0 0.0
    %553 = vmatpush.msra.mxu0 0.0
    %v554 = vand.u32 %v37, 4294901760
    %v555 = vsub.f32 %v37, %v554
    %v556 = vand.u32 %v555, 4294901760
    %557 = vmatpush.msra.mxu0 %v556
    %v558 = vand.u32 %v36, 4294901760
    %v559 = vsub.f32 %v36, %v558
    %v560 = vand.u32 %v559, 4294901760
    %561 = vmatpush.msra.mxu0 %v560
    %v562 = vand.u32 %v35, 4294901760
    %v563 = vsub.f32 %v35, %v562
    %v564 = vand.u32 %v563, 4294901760
    %565 = vmatpush.msra.mxu0 %v564
    %v566 = vand.u32 %v34, 4294901760
    %v567 = vsub.f32 %v34, %v566
    %v568 = vand.u32 %v567, 4294901760
    %569 = vmatpush.msra.mxu0 %v568
    %v570 = vand.u32 %v33, 4294901760
    %v571 = vsub.f32 %v33, %v570
    %v572 = vand.u32 %v571, 4294901760
    %573 = vmatpush.msra.mxu0 %v572
    %v574 = vand.u32 %v32, 4294901760
    %v575 = vsub.f32 %v32, %v574
    %v576 = vand.u32 %v575, 4294901760
    %577 = vmatpush.msra.mxu0 %v576
    %v578 = vand.u32 %v31, 4294901760
    %v579 = vsub.f32 %v31, %v578
    %v580 = vand.u32 %v579, 4294901760
    %581 = vmatpush.msra.mxu0 %v580
    %v582 = vand.u32 %v30, 4294901760
    %v583 = vsub.f32 %v30, %v582
    %v584 = vand.u32 %v583, 4294901760
    %585 = vmatpush.msra.mxu0 %v584
    %v586 = vand.u32 %v40, 4294901760
    %587 = vmatmul.f32.gmra.mxu0 %v586
    %v588 = vpop.f32.mrf.mxu0
    %v589 = vadd.f32 %v544, %v588
    %590 = vdwg.mxu0
    %591 = vmatpush.msra.mxu0 0.0
    %592 = vmatpush.msra.mxu0 0.0
    %593 = vmatpush.msra.mxu0 0.0
    %594 = vmatpush.msra.mxu0 0.0
    %595 = vmatpush.msra.mxu0 0.0
    %596 = vmatpush.msra.mxu0 0.0
    %597 = vmatpush.msra.mxu0 0.0
    %598 = vmatpush.msra.mxu0 0.0
    %v599 = vand.u32 %v37, 4294901760
    %600 = vmatpush.msra.mxu0 %v599
    %v601 = vand.u32 %v36, 4294901760
    %602 = vmatpush.msra.mxu0 %v601
    %v603 = vand.u32 %v35, 4294901760
    %604 = vmatpush.msra.mxu0 %v603
    %v605 = vand.u32 %v34, 4294901760
    %606 = vmatpush.msra.mxu0 %v605
    %v607 = vand.u32 %v33, 4294901760
    %608 = vmatpush.msra.mxu0 %v607
    %v609 = vand.u32 %v32, 4294901760
    %610 = vmatpush.msra.mxu0 %v609
    %v611 = vand.u32 %v31, 4294901760
    %612 = vmatpush.msra.mxu0 %v611
    %v613 = vand.u32 %v30, 4294901760
    %614 = vmatpush.msra.mxu0 %v613
    %v615 = vand.u32 %v40, 4294901760
    %616 = vmatmul.f32.gmra.mxu0 %v615
    %v617 = vpop.f32.mrf.mxu0
    %v618 = vadd.f32 %v589, %v617
    %619 = vdwg.mxu0
    %v620 = vmul.f32 %v618, 0.03125
    %vm621 = vcmask 48128
    %622 = vst.msk [vmem:[#allocation2] sm:$0xff] %vm621, %v620
    // Predicated region
    $region10: #{tpu_custom_call.1} parent=1 // pred_check
      _
    $region11: #{tpu_custom_call.1} parent=1 // pred_check_branch
      %624 = sbr.rel (0) target = $region13
    $region12: #{tpu_custom_call.1} parent=1 // pred_region
      %626 = vsyncadd [#allocation3], 0
      %s628 = sshll.u32 [#allocation2], 4
      %s629 = int_to_ptr.vmem [resolvable:$true] %s628
      %s630 = sshll.u32 %s2, 4
      %s631 = int_to_ptr.hbm [resolvable:$true] %s630
      %633 = dma.vmem_to_hbm [thread:$0]  %s629, 128, %s631, [#allocation3]
    $region13: #{tpu_custom_call.1} parent=1 // pred_fallthru
      _
    // Predicated region
    $region14: #{tpu_custom_call.1} parent=1 // pred_check
      _
    $region15: #{tpu_custom_call.1} parent=1 // pred_check_branch
      %635 = sbr.rel (0) target = $region17
    $region16: #{tpu_custom_call.1} parent=1 // pred_region
      %637 = dma.done [#allocation3], 128
    $region17: #{tpu_custom_call.1} parent=1 // pred_fallthru
      _
    %638 = vsyncpa [#allocation3], 1

</llo_original>
